<compile_context>
chip_gen: v5e
topology: v5e:2x2
jax: 0.10.0
libtpu: 0.0.40
codegen_flags: <defaults>
</compile_context>

<pallas_src>
import math
from functools import partial

import jax
import jax.numpy as jnp
from jax.experimental import pallas as pl
from jax.experimental.pallas import tpu as pltpu


# --------------------------------------------------------------------------- #
# helpers
# --------------------------------------------------------------------------- #
def _row_tile(M, tmax=256):
    t = tmax
    while t > 8 and t > M:
        t //= 2
    return t


def _pad_axis(a, axis, mult):
    n = a.shape[axis]
    pad = (-n) % mult
    if pad == 0:
        return a
    widths = [(0, 0)] * a.ndim
    widths[axis] = (0, pad)
    return jnp.pad(a, widths)


def _sigmoid(x):
    return 1.0 / (1.0 + jnp.exp(-x))


# --------------------------------------------------------------------------- #
# generic matmul (MXU, bf16 operands, f32 accumulate, lane-dense output)
# --------------------------------------------------------------------------- #
def _matmul_kernel(x_ref, w_ref, o_ref):
    o_ref[...] = jnp.dot(x_ref[...], w_ref[...],
                         preferred_element_type=jnp.float32).astype(o_ref.dtype)


def matmul_pallas(x, w, *, out_dtype=jnp.float32, tm_max=256):
    """x:(M,K) @ w:(K,N) -> (M,N).  Rows padded to tile, N padded to 128."""
    M, Kd = x.shape
    Nout = w.shape[1]
    tm = _row_tile(M, tm_max)
    xp = _pad_axis(x, 0, tm)
    wp = _pad_axis(w, 1, 128)
    Mp, Np = xp.shape[0], wp.shape[1]
    out = pl.pallas_call(
        _matmul_kernel,
        out_shape=jax.ShapeDtypeStruct((Mp, Np), out_dtype),
        grid=(Mp // tm,),
        in_specs=[pl.BlockSpec((tm, Kd), lambda i: (i, 0)),
                  pl.BlockSpec((Kd, Np), lambda i: (0, 0))],
        out_specs=pl.BlockSpec((tm, Np), lambda i: (i, 0)),
        compiler_params=pltpu.CompilerParams(
            dimension_semantics=("parallel",)),
    )(xp.astype(jnp.bfloat16), wp.astype(jnp.bfloat16))
    return out[:M, :Nout]


def batched_matmul_pallas(x, w, *, out_dtype=jnp.float32, tm_max=256):
    """x:(K,M,D) @ w:(K,D,N) -> (K,M,N).  One launch for all K directions."""
    Kb, M, Din = x.shape
    Nout = w.shape[2]
    tm = _row_tile(M, tm_max)
    xp = _pad_axis(x, 1, tm)
    wp = _pad_axis(w, 2, 128)
    Mp, Np = xp.shape[1], wp.shape[2]
    out = pl.pallas_call(
        _matmul_kernel,
        out_shape=jax.ShapeDtypeStruct((Kb, Mp, Np), out_dtype),
        grid=(Kb, Mp // tm),
        in_specs=[pl.BlockSpec((None, tm, Din), lambda k, i: (k, i, 0)),
                  pl.BlockSpec((None, Din, Np), lambda k, i: (k, 0, 0))],
        out_specs=pl.BlockSpec((None, tm, Np), lambda k, i: (k, i, 0)),
        compiler_params=pltpu.CompilerParams(
            dimension_semantics=("parallel", "parallel")),
    )(xp.astype(jnp.bfloat16), wp.astype(jnp.bfloat16))
    return out[:, :M, :Nout]


# --------------------------------------------------------------------------- #
# depthwise 3x3 conv + SiLU (bf16 input DMA, f32 accumulate, halo in-block)
# --------------------------------------------------------------------------- #
def _dwconv_silu_kernel(x_ref, w_ref, b_ref, o_ref, *, H, W):
    x = x_ref[...].astype(jnp.float32)                 # (H+2, W+2, C)
    acc = jnp.zeros(o_ref.shape, jnp.float32)          # (H, W, C)
    for dy in range(3):
        for dx in range(3):
            acc = acc + x[dy:dy + H, dx:dx + W, :] * w_ref[dy * 3 + dx]
    acc = acc + b_ref[...]
    o_ref[...] = acc * _sigmoid(acc)                   # SiLU


def dwconv3x3_silu_pallas(x_img, w9, b):
    """x_img:(B,H,W,C) channels-last; w9:(9,C) taps row-major (dy,dx); b:(C,)."""
    Bn, H, W, C = x_img.shape
    xp = jnp.pad(x_img, ((0, 0), (1, 1), (1, 1), (0, 0)))
    # TODO(synk): strip-tile over H with a 2-row halo (manual DMA) for large
    #             images to bound VMEM on v7x and give >B pipeline steps.
    return pl.pallas_call(
        partial(_dwconv_silu_kernel, H=H, W=W),
        out_shape=jax.ShapeDtypeStruct((Bn, H, W, C), jnp.float32),
        grid=(Bn,),
        in_specs=[pl.BlockSpec((None, H + 2, W + 2, C), lambda b: (b, 0, 0, 0)),
                  pl.BlockSpec((9, 1, C), lambda b: (0, 0, 0)),
                  pl.BlockSpec((1, 1, C), lambda b: (0, 0, 0))],
        out_specs=pl.BlockSpec((None, H, W, C), lambda b: (b, 0, 0, 0)),
        compiler_params=pltpu.CompilerParams(
            dimension_semantics=("parallel",)),
    )(xp.astype(jnp.bfloat16),
      w9.reshape(9, 1, C).astype(jnp.float32),
      b.reshape(1, 1, C).astype(jnp.float32))


# --------------------------------------------------------------------------- #
# fused LayerNorm(out_norm) + y*SiLU(z) gate + out_proj matmul
# --------------------------------------------------------------------------- #
def _ln_gate_proj_kernel(y_ref, z_ref, lnw_ref, lnb_ref, w_ref, o_ref, *, eps):
    y = y_ref[...]                                     # (tm, C) f32
    mu = jnp.mean(y, axis=-1, keepdims=True)
    yc = y - mu
    var = jnp.mean(yc * yc, axis=-1, keepdims=True)
    normed = yc * jax.lax.rsqrt(var + eps) * lnw_ref[...] + lnb_ref[...]
    z = z_ref[...].astype(jnp.float32)
    g = normed * (z * _sigmoid(z))
    o_ref[...] = jnp.dot(g.astype(jnp.bfloat16), w_ref[...],
                         preferred_element_type=jnp.float32)


def ln_gate_proj_pallas(y, z, lnw, lnb, w_out, *, eps=1e-5, tm_max=256):
    M, C = y.shape
    Nout = w_out.shape[1]
    tm = _row_tile(M, tm_max)
    yp = _pad_axis(y, 0, tm)
    zp = _pad_axis(z, 0, tm)
    wp = _pad_axis(w_out, 1, 128)                      # lane-dense output
    Mp, Np = yp.shape[0], wp.shape[1]
    out = pl.pallas_call(
        partial(_ln_gate_proj_kernel, eps=eps),
        out_shape=jax.ShapeDtypeStruct((Mp, Np), jnp.float32),
        grid=(Mp // tm,),
        in_specs=[pl.BlockSpec((tm, C), lambda i: (i, 0)),
                  pl.BlockSpec((tm, C), lambda i: (i, 0)),
                  pl.BlockSpec((1, C), lambda i: (0, 0)),
                  pl.BlockSpec((1, C), lambda i: (0, 0)),
                  pl.BlockSpec((C, Np), lambda i: (0, 0))],
        out_specs=pl.BlockSpec((tm, Np), lambda i: (i, 0)),
        compiler_params=pltpu.CompilerParams(
            dimension_semantics=("parallel",)),
    )(yp.astype(jnp.float32), zp,
      lnw.reshape(1, C).astype(jnp.float32),
      lnb.reshape(1, C).astype(jnp.float32),
      wp.astype(jnp.bfloat16))
    return out[:M, :Nout]


# --------------------------------------------------------------------------- #
# selective scan (Mamba recurrence), L-chunked so VMEM is bounded for any L
#   lanes   : R = B*K*d_inner channel rows (ordered b-major, then k, then c)
#   sublanes: N = d_state
#   grid    : (R/128 parallel, L/Lc arbitrary) with h carried in VMEM scratch
# --------------------------------------------------------------------------- #
def _selective_scan_kernel(u_ref, dt_ref, dtb_ref, A_ref, D_ref, Bg_ref, Cg_ref,
                           y_ref, h_ref, dA_ref, dBuB_ref, Cb_ref, *,
                           Lc, N, d_inner, nG, G, CH):
    r = pl.program_id(0)
    LANE = u_ref.shape[1]

    @pl.when(pl.program_id(1) == 0)
    def _():
        h_ref[...] = jnp.zeros_like(h_ref)

    # ---------------- carry-independent pre-pass for this L chunk -----------
    v = dt_ref[...] + dtb_ref[...]                                     # (Lc, LANE)
    delta = jnp.maximum(v, 0.0) + jnp.log(1.0 + jnp.exp(-jnp.abs(v)))  # softplus
    dBu = delta * u_ref[...]                                           # (Lc, LANE)
    dA_ref[...] = jnp.exp(delta[:, None, :] * A_ref[...][None, :, :])  # (Lc,N,LANE)

    # broadcast B/C from per-group (G) columns to per-lane with a 0/1 matmul
    lane = jax.lax.broadcasted_iota(jnp.int32, (G, LANE), 1)
    grp = jax.lax.broadcasted_iota(jnp.int32, (G, LANE), 0)
    E = (grp == r * nG + lane // d_inner).astype(jnp.float32)          # (G, LANE)
    Bb = jnp.dot(Bg_ref[...], E, preferred_element_type=jnp.float32)   # (Lc*N,LANE)
    dBuB_ref[...] = Bb.reshape(Lc, N, LANE) * dBu[:, None, :]
    Cb = jnp.dot(Cg_ref[...], E, preferred_element_type=jnp.float32)
    Cb_ref[...] = Cb.reshape(Lc, N, LANE)

    # ---------------- sequential scan: FMAs + one batched reduce per CH rows
    def chunk(c, h):
        base = pl.multiple_of(c * CH, CH)
        hs = []
        for j in range(CH):
            h = dA_ref[base + j] * h + dBuB_ref[base + j]              # (N, LANE)
            hs.append(h)
        hstack = jnp.stack(hs, axis=0)                                 # (CH,N,LANE)
        yc = jnp.sum(Cb_ref[pl.ds(base, CH)] * hstack, axis=1)         # (CH, LANE)
        y_ref[pl.ds(base, CH), :] = yc + D_ref[...] * u_ref[pl.ds(base, CH), :]
        return h

    h_ref[...] = jax.lax.fori_loop(0, Lc // CH, chunk, h_ref[...])


def selective_scan_pallas(u_LR, dt_LR, dtb_R, A_NR, D_R, Bg, Cg, *, d_inner):
    L, R = u_LR.shape
    N = A_NR.shape[0]
    G = Bg.shape[1]
    LANE = 128
    assert R % LANE == 0, "R = B*K*d_inner must be a multiple of 128"
    assert LANE % d_inner == 0, "d_inner must divide 128"
    # TODO(synk): generalize the lane/group mapping for d_inner not dividing 128.
    nG = LANE // d_inner

    # L-chunk size bounds the VMEM scratch (3 * Lc * N * 128 * 4 B) for any L.
    Lc = L
    for t in (256, 128, 64, 32, 16, 8):
        if L % t == 0:
            Lc = t
            break
    CH = 16 if Lc % 16 == 0 else (8 if Lc % 8 == 0 else (4 if Lc % 4 == 0 else 1))

    kernel = partial(_selective_scan_kernel, Lc=Lc, N=N, d_inner=d_inner,
                     nG=nG, G=G, CH=CH)
    return pl.pallas_call(
        kernel,
        out_shape=jax.ShapeDtypeStruct((L, R), jnp.float32),
        grid=(R // LANE, L // Lc),
        in_specs=[
            pl.BlockSpec((Lc, LANE), lambda r, l: (l, r)),      # u
            pl.BlockSpec((Lc, LANE), lambda r, l: (l, r)),      # dt
            pl.BlockSpec((1, LANE), lambda r, l: (0, r)),       # dt bias
            pl.BlockSpec((N, LANE), lambda r, l: (0, r)),       # A
            pl.BlockSpec((1, LANE), lambda r, l: (0, r)),       # D
            pl.BlockSpec((Lc * N, G), lambda r, l: (l, 0)),     # B (compact/group)
            pl.BlockSpec((Lc * N, G), lambda r, l: (l, 0)),     # C (compact/group)
        ],
        out_specs=pl.BlockSpec((Lc, LANE), lambda r, l: (l, r)),
        scratch_shapes=[pltpu.VMEM((N, LANE), jnp.float32),      # carried h
                        pltpu.VMEM((Lc, N, LANE), jnp.float32),  # exp(delta*A)
                        pltpu.VMEM((Lc, N, LANE), jnp.float32),  # delta*u*B
                        pltpu.VMEM((Lc, N, LANE), jnp.float32)], # C broadcast
        compiler_params=pltpu.CompilerParams(
            dimension_semantics=("parallel", "arbitrary"),
            vmem_limit_bytes=32 * 1024 * 1024),
    )(u_LR, dt_LR, dtb_R, A_NR, D_R, Bg, Cg)


# =============================================================================
# SS2D forward (glue in plain JAX)
# =============================================================================
def ss2d_forward(p, x):
    """SS2D.forward.  x: (B, H, W, d_model) float32 -> (B, H, W, d_model)."""
    B_, H, W, dm = x.shape
    d_inner = p['out_proj_w'].shape[0]
    d_state = p['A_logs'].shape[1]
    dt_rank = p['dt_projs_w'].shape[2]
    K = 4
    L = H * W
    M = B_ * H * W

    # ---- in_proj + chunk (bf16 output: consumers are the conv and the gate)
    xz = matmul_pallas(x.reshape(M, dm), p['in_proj_w'],
                       out_dtype=jnp.bfloat16)                    # (M, 2*d_inner)
    x_s = xz[:, :d_inner]
    z = xz[:, d_inner:]

    # ---- depthwise conv 3x3 + SiLU ----------------------------------------
    xc = dwconv3x3_silu_pallas(x_s.reshape(B_, H, W, d_inner),
                               p['conv_w'], p['conv_b'])          # (B,H,W,C) f32

    # ---- 4 scan directions (forward_corev0) -------------------------------
    x_nchw = jnp.transpose(xc, (0, 3, 1, 2))                      # (B,C,H,W)
    xhw = x_nchw.reshape(B_, d_inner, L)
    xwh = jnp.transpose(x_nchw, (0, 1, 3, 2)).reshape(B_, d_inner, L)
    x_hwwh = jnp.stack([xhw, xwh], axis=1)                        # (B,2,C,L)
    xs = jnp.concatenate([x_hwwh, jnp.flip(x_hwwh, axis=-1)], axis=1)  # (B,K,C,L)
    # TODO(synk): fold the direction flips / (K,B,L,C)->(L,R) transposes into
    #             the scan's BlockSpec index_maps to avoid HBM materialization.

    # ---- fused x_proj + dt_proj: weights pre-composed, ONE batched launch ---
    xk = jnp.transpose(xs, (1, 0, 3, 2)).reshape(K, B_ * L, d_inner)   # (K,BL,C)
    w_xT = jnp.transpose(p['x_proj_w'], (0, 2, 1))                     # (K,C,r+2S)
    w_dt_comp = jnp.matmul(w_xT[..., :dt_rank],
                           jnp.transpose(p['dt_projs_w'], (0, 2, 1)))  # (K,C,C)
    w_fused = jnp.concatenate([w_dt_comp, w_xT[..., dt_rank:]], axis=-1)  # (K,C,C+2S)
    proj = batched_matmul_pallas(xk, w_fused)                          # (K,BL,C+2S)
    dts = proj[..., :d_inner]
    Bs = proj[..., d_inner:d_inner + d_state]
    Cs = proj[..., d_inner + d_state:d_inner + 2 * d_state]

    # ---- selective scan inputs: lanes ordered (b, k, c) --------------------
    R = B_ * K * d_inner
    u_LR = jnp.transpose(xs, (3, 0, 1, 2)).reshape(L, R)
    dt_LR = jnp.transpose(dts.reshape(K, B_, L, d_inner),
                          (2, 1, 0, 3)).reshape(L, R)
    Bg = jnp.transpose(Bs.reshape(K, B_, L, d_state),
                       (2, 3, 1, 0)).reshape(L * d_state, B_ * K)
    Cg = jnp.transpose(Cs.reshape(K, B_, L, d_state),
                       (2, 3, 1, 0)).reshape(L * d_state, B_ * K)
    A_kc = -jnp.exp(p['A_logs'].astype(jnp.float32))                   # (K*C, S)
    A_NR = jnp.transpose(jnp.tile(A_kc, (B_, 1)), (1, 0))              # (S, R)
    D_R = jnp.tile(p['Ds'].astype(jnp.float32), B_).reshape(1, R)
    dtb_R = jnp.tile(p['dt_projs_bias'].reshape(-1).astype(jnp.float32),
                     B_).reshape(1, R)

    y_LR = selective_scan_pallas(u_LR, dt_LR, dtb_R, A_NR, D_R, Bg, Cg,
                                 d_inner=d_inner)                      # (L, R)
    out_y = jnp.transpose(y_LR.reshape(L, B_, K, d_inner), (1, 2, 3, 0))  # (B,K,C,L)

    # ---- merge the 4 directions --------------------------------------------
    inv_y = jnp.flip(out_y[:, 2:4], axis=-1)                           # (B,2,C,L)
    wh_y = jnp.transpose(out_y[:, 1].reshape(B_, d_inner, W, H),
                         (0, 1, 3, 2)).reshape(B_, d_inner, L)
    invwh_y = jnp.transpose(inv_y[:, 1].reshape(B_, d_inner, W, H),
                            (0, 1, 3, 2)).reshape(B_, d_inner, L)
    ycore = out_y[:, 0] + inv_y[:, 0] + wh_y + invwh_y                 # (B,C,L)
    ycore = jnp.transpose(ycore, (0, 2, 1)).reshape(M, d_inner)

    # ---- fused out_norm + y*SiLU(z) + out_proj ------------------------------
    out = ln_gate_proj_pallas(ycore, z, p['out_norm_w'], p['out_norm_b'],
                              p['out_proj_w'], eps=1e-5)               # (M, dm)
    # dropout=0.0 in the reference -> identity
    return out.reshape(B_, H, W, dm)


# =============================================================================
# deterministic parameter init (shapes follow SS2D.__init__, expand=0.5)
# =============================================================================
def init_ss2d_params(key, d_model, d_state=16, expand=0.5,
                     dt_min=0.001, dt_max=0.1, dt_init_floor=1e-4):
    d_inner = int(expand * d_model)
    dt_rank = math.ceil(d_model / 16)
    K = 4
    ks = iter(jax.random.split(key, 16))

    def uni(shape, a, b):
        return jax.random.uniform(next(ks), shape, jnp.float32, a, b)

    lim_in = 1.0 / math.sqrt(d_model)
    lim_c = 1.0 / math.sqrt(9.0)              # depthwise fan_in = 1*3*3
    lim_x = 1.0 / math.sqrt(d_inner)
    dt_std = dt_rank ** -0.5

    dt = jnp.exp(uni((K, d_inner), math.log(dt_min), math.log(dt_max)))
    dt = jnp.maximum(dt, dt_init_floor)
    dt_projs_bias = dt + jnp.log(-jnp.expm1(-dt))                  # inv softplus

    A_logs = jnp.log(jnp.tile(jnp.arange(1, d_state + 1, dtype=jnp.float32)[None, :],
                              (K * d_inner, 1)))                   # (K*C, S)

    return dict(
        in_proj_w=uni((d_model, 2 * d_inner), -lim_in, lim_in),    # bias=False
        conv_w=uni((9, d_inner), -lim_c, lim_c),                   # depthwise taps
        conv_b=uni((d_inner,), -lim_c, lim_c),
        x_proj_w=uni((K, dt_rank + 2 * d_state, d_inner), -lim_x, lim_x),
        dt_projs_w=uni((K, d_inner, dt_rank), -dt_std, dt_std),
        dt_projs_bias=dt_projs_bias,                               # (K, C)
        A_logs=A_logs,
        Ds=jnp.ones((K * d_inner,), jnp.float32),
        out_norm_w=jnp.ones((d_inner,), jnp.float32),
        out_norm_b=jnp.zeros((d_inner,), jnp.float32),
        out_proj_w=uni((d_inner, d_model), -lim_x, lim_x),         # bias=False
    )


if __name__ == "__main__":
    key = jax.random.PRNGKey(0)
    pkey, xkey = jax.random.split(key)
    B, H, W, d_model = 2, 16, 16, 64          # d_inner=32, d_state=16, dt_rank=4
    params = init_ss2d_params(pkey, d_model, d_state=16)
    x = jax.random.normal(xkey, (B, H, W, d_model), jnp.float32)
    out = ss2d_forward(params, x)
    out = jax.block_until_ready(out)
    assert out.shape == (B, H, W, d_model) and out.dtype == jnp.float32
    assert bool(jnp.all(jnp.isfinite(out)))
    print("KERNEL_OK")
</pallas_src>

<mosaic_0001>
module attributes {stable_mosaic.version = 11 : i64} {
  func.func @_matmul_kernel(%arg0: i32, %arg1: memref<256x64xbf16, #tpu.memory_space<vmem>>, %arg2: memref<64x128xbf16, #tpu.memory_space<vmem>>, %arg3: memref<256x128xbf16, #tpu.memory_space<vmem>>) attributes {dimension_semantics = [#tpu.dimension_semantics<parallel>], iteration_bounds = array<i64: 2>, scalar_prefetch = 0 : i64, scratch_operands = 0 : i64, tpu.core_type = #tpu.core_type<tc>, window_params = [{transform_indices = @transform_0, window_bounds = array<i64: 256, 64>}, {pipeline_mode = #tpu.pipeline_mode<synchronous>, transform_indices = @transform_1, window_bounds = array<i64: 64, 128>}, {transform_indices = @transform_2, window_bounds = array<i64: 256, 128>}]} {
    %c0 = arith.constant 0 : index
    %c0_0 = arith.constant 0 : index
    %0 = vector.load %arg1[%c0, %c0_0] : memref<256x64xbf16, #tpu.memory_space<vmem>>, vector<256x64xbf16>
    %c0_1 = arith.constant 0 : index
    %c0_2 = arith.constant 0 : index
    %1 = vector.load %arg2[%c0_1, %c0_2] : memref<64x128xbf16, #tpu.memory_space<vmem>>, vector<64x128xbf16>
    %cst = arith.constant dense<0.000000e+00> : vector<256x128xf32>
    %2 = tpu.matmul %0, %1, %cst {dimension_numbers = #tpu.dot_dimension_numbers<[1], [0], [0], [1], [0, 0, 1, 1], [], []>} : vector<256x64xbf16>, vector<64x128xbf16>, vector<256x128xf32> -> vector<256x128xf32>
    %3 = arith.truncf %2 : vector<256x128xf32> to vector<256x128xbf16>
    %c0_3 = arith.constant 0 : index
    %c0_4 = arith.constant 0 : index
    %4 = vector.load %arg3[%c0_3, %c0_4] : memref<256x128xbf16, #tpu.memory_space<vmem>>, vector<256x128xbf16>
    tpu.vector_store %arg3[%c0_3, %c0_4], %3 {strides = array<i32>} : memref<256x128xbf16, #tpu.memory_space<vmem>>, vector<256x128xbf16>,
    return
  }
  func.func @transform_0(%arg0: i32) -> (i32, i32) {
    %c0_i32 = arith.constant 0 : i32
    %c0_i32_0 = arith.constant 0 : i32
    return %arg0, %c0_i32 : i32, i32
  }
  func.func @transform_1(%arg0: i32) -> (i32, i32) {
    %c0_i32 = arith.constant 0 : i32
    %c0_i32_0 = arith.constant 0 : i32
    %c0_i32_1 = arith.constant 0 : i32
    return %c0_i32, %c0_i32_0 : i32, i32
  }
  func.func @transform_2(%arg0: i32) -> (i32, i32) {
    %c0_i32 = arith.constant 0 : i32
    %c0_i32_0 = arith.constant 0 : i32
    return %arg0, %c0_i32 : i32, i32
  }
}

</mosaic_0001>

<llo_original>
// kernel: tpu_custom_call.1
$region0: #{tpu_custom_call.1}
  #allocation0 [shape = 'u32[]', space=smem, size = 0x4, offset = 0x4, fixed_abs, tag = 'smem constant byte address 0x4 - core index']
  #allocation1 [shape = 'u32[72,128]{1,0:T(1,128)}', space=vmem, size = 0x9000, scoped, tag = 'internal scratch']
  %s0 = inlined_call_operand.vmem [shape: bf16[512,64], index: 0, kind: input, shape index: {}]
  %s1 = inlined_call_operand.vmem [shape: bf16[64,128], index: 1, kind: input, shape index: {}]
  %s2 = inlined_call_operand.hbm [shape: bf16[512,128], index: 2, kind: output, shape index: {}]
  %s3 = sld [smem:[#allocation0]]
  $region41: #{tpu_custom_call.1} parent=0
    _
  %s5 = ssub.s32 1, %s3
  %s6 = scalar_select 0, %s5, %s3
  $region1: #{tpu_custom_call.1} parent=0
    #allocation2 [shape = 'u8[131072]{0}', space=vmem, size = 0x20000, scoped, tag = 'output window, operand 0']
    #allocation3 [shape = 's32[2]{0}', space=sflag, size = 0x8, scoped, tag = 'scoped memory for tpu_custom_call.1']
    %7 = vsyncpa [#allocation3], 0
    %s8 = scalar_lea.sflag [#allocation3], 1
    %9 = vsyncpa %s8, 0
    loop: start=0, step=1, limit=4
    $region2: #{tpu_custom_call.1} parent=1 // loop_pre_header
      _
    $region3: #{tpu_custom_call.1} parent=1 // loop_header
      %s11 = sphi 0, %s15
      %p12 = scmp.ge.s32.totalorder %s11, 4
      %s21 = sphi 0, %s23
      %s24 = sphi 0, %s21
      %s25 = sphi 0, %s24
      %s41 = sphi 0, %s25
      %s45 = sphi 0, %s45
      %s47 = sphi 0, %s45
      %s48 = sphi 0, %s47
      %s62 = sphi 0, %s48
      %s68 = sphi 0, %s70
      %s71 = sphi 0, %s68
      %s72 = sphi 0, %s71
      %s88 = sphi 0, %s72
    $region4: #{tpu_custom_call.1} parent=1 // loop_header_branch
      %14 = sbr.rel (%p12) target = $region8
    $region5: #{tpu_custom_call.1} parent=1 // loop_body
      %s16 = ssub.s32 %s11, 1
      %s17 = ssub.s32 %s11, 2
      %s18 = sadd.s32 %s11, 1
      %s19 = ssub.s32 %s11, %s18
      %p20 = scmp.eq.s32.totalorder %s19, 0
      %s22 = sadd.s32 %s21, 1
      %s23 = scalar_select %p20, %s21, %s22
      %p26 = pneg %p20
      %p27 = scmp.eq.s32.totalorder %s11, 1
      %p28 = por %p26, %p27
      %p29 = scmp.ne.s32.totalorder %s21, %s24
      %p30 = scmp.eq.s32.totalorder %s11, 0
      %p31 = por %p29, %p30
      %p32 = scmp.ne.s32.totalorder %s21, %s24
      %p33 = scmp.eq.s32.totalorder %s16, 1
      %p34 = por %p32, %p33
      %p35 = scmp.ne.s32.totalorder %s24, %s25
      %p36 = scmp.eq.s32.totalorder %s16, 0
      %p37 = por %p35, %p36
      %p38 = scmp.ne.s32.totalorder %s24, %s25
      %p39 = scmp.eq.s32.totalorder %s17, 1
      %p40 = por %p38, %p39
      %p42 = scmp.ne.s32.totalorder %s25, %s41
      %p43 = scmp.eq.s32.totalorder %s17, 0
      %p44 = por %p42, %p43
      %s46 = sadd.s32 %s45, 1
      %p49 = scmp.eq.s32.totalorder %s11, 1
      %p50 = scmp.ne.s32.totalorder %s45, %s47
      %p51 = scmp.eq.s32.totalorder %s11, 0
      %p52 = por %p50, %p51
      %p53 = scmp.ne.s32.totalorder %s45, %s47
      %p54 = scmp.eq.s32.totalorder %s16, 1
      %p55 = por %p53, %p54
      %p56 = scmp.ne.s32.totalorder %s47, %s48
      %p57 = scmp.eq.s32.totalorder %s16, 0
      %p58 = por %p56, %p57
      %p59 = scmp.ne.s32.totalorder %s47, %s48
      %p60 = scmp.eq.s32.totalorder %s17, 1
      %p61 = por %p59, %p60
      %p63 = scmp.ne.s32.totalorder %s48, %s62
      %p64 = scmp.eq.s32.totalorder %s17, 0
      %p65 = por %p63, %p64
      %s66 = ssub.s32 %s11, %s18
      %p67 = scmp.eq.s32.totalorder %s66, 0
      %s69 = sadd.s32 %s68, 1
      %s70 = scalar_select %p67, %s68, %s69
      %p73 = pneg %p67
      %p74 = scmp.eq.s32.totalorder %s11, 1
      %p75 = por %p73, %p74
      %p76 = scmp.ne.s32.totalorder %s68, %s71
      %p77 = scmp.eq.s32.totalorder %s11, 0
      %p78 = por %p76, %p77
      %p79 = scmp.ne.s32.totalorder %s68, %s71
      %p80 = scmp.eq.s32.totalorder %s16, 1
      %p81 = por %p79, %p80
      %p82 = scmp.ne.s32.totalorder %s71, %s72
      %p83 = scmp.eq.s32.totalorder %s16, 0
      %p84 = por %p82, %p83
      %p85 = scmp.ne.s32.totalorder %s71, %s72
      %p86 = scmp.eq.s32.totalorder %s17, 1
      %p87 = por %p85, %p86
      %p89 = scmp.ne.s32.totalorder %s72, %s88
      %p90 = scmp.eq.s32.totalorder %s17, 0
      %p91 = por %p89, %p90
      %p92 = scmp.le.s32.totalorder 1, %s11
      %p93 = scmp.lt.s32.totalorder %s11, 3
      %p94 = pnand %p92, %p93
      %p95 = pneg %p94
      // Predicated region
      $region9: #{tpu_custom_call.1} parent=5 // pred_check
        _
      $region10: #{tpu_custom_call.1} parent=5 // pred_check_branch
        %97 = sbr.rel (%p94) target = $region12
      $region11: #{tpu_custom_call.1} parent=5 // pred_region
        %s98 = ssub.s32 %s11, 1
        // Predicated region
        $region13: #{tpu_custom_call.1} parent=11 // pred_check
          %p99 = pneg %p58
        $region14: #{tpu_custom_call.1} parent=11 // pred_check_branch
          %101 = sbr.rel (%p99) target = $region16
        $region15: #{tpu_custom_call.1} parent=11 // pred_region
          _
        $region16: #{tpu_custom_call.1} parent=11 // pred_fallthru
          _
      $region12: #{tpu_custom_call.1} parent=5 // pred_fallthru
        _
      %p102 = scmp.lt.s32.totalorder %s11, 2
      // Predicated region
      $region17: #{tpu_custom_call.1} parent=5 // pred_check
        %p103 = pneg %p102
      $region18: #{tpu_custom_call.1} parent=5 // pred_check_branch
        %105 = sbr.rel (%p103) target = $region20
      $region19: #{tpu_custom_call.1} parent=5 // pred_region
        // Predicated region
        $region21: #{tpu_custom_call.1} parent=19 // pred_check
          %p106 = pneg %p31
        $region22: #{tpu_custom_call.1} parent=19 // pred_check_branch
          %108 = sbr.rel (%p106) target = $region24
        $region23: #{tpu_custom_call.1} parent=19 // pred_region
          %s109 = smul.u32 32, %s11
          %p110 = scmp.lt.s32.totalorder %s109, 63
          %s111 = scalar_select %p110, %s109, 63
          %s112 = smul.addr %s111, 4
          %s113 = scalar_lea.vmem %s0, %s112
          %s114 = smul.u32 32, %s11
        $region24: #{tpu_custom_call.1} parent=19 // pred_fallthru
          _
      $region20: #{tpu_custom_call.1} parent=5 // pred_fallthru
        _
      %p115 = scmp.le.s32.totalorder 1, %s11
      %p116 = scmp.lt.s32.totalorder %s11, 3
      %p117 = pnand %p115, %p116
      %p118 = pneg %p117
      // Predicated region
      $region25: #{tpu_custom_call.1} parent=5 // pred_check
        _
      $region26: #{tpu_custom_call.1} parent=5 // pred_check_branch
        %120 = sbr.rel (%p117) target = $region28
      $region27: #{tpu_custom_call.1} parent=5 // pred_region
        %s121 = ssub.s32 %s11, 1
        %s122 = smul.u32 32, %s16
        %p123 = scmp.lt.s32.totalorder %s122, 63
        %s124 = scalar_select %p123, %s122, 63
        %s125 = smul.addr %s124, 4
        %s126 = scalar_lea.vmem %s0, %s125
        %p127 = pneg %p37
        %p128 = pneg %p34
        %p129 = pneg %p58
        %p130 = pneg %p55
        %p131 = pneg %p84
        %p132 = pneg %p81
        %s133 = sand.u32 %s71, 1
        %s134 = scalar_lea.sflag [#allocation3], %s133
        %s135 = sand.u32 %s71, 1
        %s136 = smul.addr %s135, 128
        %s137 = scalar_lea.vmem [#allocation2], %s136
        %s138 = smul.u32 32, %s16
        %p139 = scmp.lt.s32.totalorder %s138, 63
        %s140 = scalar_select %p139, %s138, 63
        %s141 = smul.addr %s140, 4
        %s142 = scalar_lea.vmem %s0, %s141
        %s143 = smul.u32 32, %s16
        %s144 = smul.u32 32, %s16
        %v146 = vld [vmem:[%s142] sm:$0xf]
        %v147 = vld [vmem:[%s142 + $0x4] sm:$0xf]
        %v148 = vld [vmem:[%s142 + $0x8] sm:$0xf]
        %v149 = vld [vmem:[%s142 + $0xc] sm:$0xf]
        %v150 = vld [vmem:[%s142 + $0x10] sm:$0xf]
        %v151 = vld [vmem:[%s142 + $0x14] sm:$0xf]
        %v152 = vld [vmem:[%s142 + $0x18] sm:$0xf]
        %v153 = vld [vmem:[%s142 + $0x1c] sm:$0xf]
        %v154 = vld [vmem:[%s142 + $0x20] sm:$0xf]
        %v155 = vld [vmem:[%s142 + $0x24] sm:$0xf]
        %v156 = vld [vmem:[%s142 + $0x28] sm:$0xf]
        %v157 = vld [vmem:[%s142 + $0x2c] sm:$0xf]
        %v158 = vld [vmem:[%s142 + $0x30] sm:$0xf]
        %v159 = vld [vmem:[%s142 + $0x34] sm:$0xf]
        %v160 = vld [vmem:[%s142 + $0x38] sm:$0xf]
        %v161 = vld [vmem:[%s142 + $0x3c] sm:$0xf]
        %v162 = vld [vmem:[%s142 + $0x40] sm:$0xf]
        %v163 = vld [vmem:[%s142 + $0x44] sm:$0xf]
        %v164 = vld [vmem:[%s142 + $0x48] sm:$0xf]
        %v165 = vld [vmem:[%s142 + $0x4c] sm:$0xf]
        %v166 = vld [vmem:[%s142 + $0x50] sm:$0xf]
        %v167 = vld [vmem:[%s142 + $0x54] sm:$0xf]
        %v168 = vld [vmem:[%s142 + $0x58] sm:$0xf]
        %v169 = vld [vmem:[%s142 + $0x5c] sm:$0xf]
        %v170 = vld [vmem:[%s142 + $0x60] sm:$0xf]
        %v171 = vld [vmem:[%s142 + $0x64] sm:$0xf]
        %v172 = vld [vmem:[%s142 + $0x68] sm:$0xf]
        %v173 = vld [vmem:[%s142 + $0x6c] sm:$0xf]
        %v174 = vld [vmem:[%s142 + $0x70] sm:$0xf]
        %v175 = vld [vmem:[%s142 + $0x74] sm:$0xf]
        %v176 = vld [vmem:[%s142 + $0x78] sm:$0xf]
        %v177 = vld [vmem:[%s142 + $0x7c] sm:$0xf]
        %v178 = vld [vmem:[%s1] sm:$0xf]
        %v179 = vld [vmem:[%s1 + $0x4] sm:$0xf]
        %v180 = vld [vmem:[%s1 + $0x8] sm:$0xf]
        %v181 = vld [vmem:[%s1 + $0xc] sm:$0xf]
        %v182 = vld [vmem:[%s1 + $0x10] sm:$0xf]
        %v183 = vld [vmem:[%s1 + $0x14] sm:$0xf]
        %v184 = vld [vmem:[%s1 + $0x18] sm:$0xf]
        %v185 = vld [vmem:[%s1 + $0x1c] sm:$0xf]
        %v218 = vunpack.c.l.b16 %v146
        %v219 = vunpack.c.l.b16 %v147
        %v220 = vunpack.c.l.b16 %v148
        %v221 = vunpack.c.l.b16 %v149
        %v222 = vunpack.c.l.b16 %v150
        %v223 = vunpack.c.l.b16 %v151
        %v224 = vunpack.c.l.b16 %v152
        %v225 = vunpack.c.l.b16 %v153
        %v226 = vunpack.c.l.b16 %v154
        %v227 = vunpack.c.l.b16 %v155
        %v228 = vunpack.c.l.b16 %v156
        %v229 = vunpack.c.l.b16 %v157
        %v230 = vunpack.c.l.b16 %v158
        %v231 = vunpack.c.l.b16 %v159
        %v232 = vunpack.c.l.b16 %v160
        %v233 = vunpack.c.l.b16 %v161
        %v234 = vunpack.c.l.b16 %v162
        %v235 = vunpack.c.l.b16 %v163
        %v236 = vunpack.c.l.b16 %v164
        %v237 = vunpack.c.l.b16 %v165
        %v238 = vunpack.c.l.b16 %v166
        %v239 = vunpack.c.l.b16 %v167
        %v240 = vunpack.c.l.b16 %v168
        %v241 = vunpack.c.l.b16 %v169
        %v242 = vunpack.c.l.b16 %v170
        %v243 = vunpack.c.l.b16 %v171
        %v244 = vunpack.c.l.b16 %v172
        %v245 = vunpack.c.l.b16 %v173
        %v246 = vunpack.c.l.b16 %v174
        %v247 = vunpack.c.l.b16 %v175
        %v248 = vunpack.c.l.b16 %v176
        %v249 = vunpack.c.l.b16 %v177
        %v250 = vpack.c.b16 %v219, %v218
        %v251 = vpack.c.b16 %v221, %v220
        %v252 = vpack.c.b16 %v223, %v222
        %v253 = vpack.c.b16 %v225, %v224
        %v254 = vpack.c.b16 %v227, %v226
        %v255 = vpack.c.b16 %v229, %v228
        %v256 = vpack.c.b16 %v231, %v230
        %v257 = vpack.c.b16 %v233, %v232
        %v258 = vpack.c.b16 %v235, %v234
        %v259 = vpack.c.b16 %v237, %v236
        %v260 = vpack.c.b16 %v239, %v238
        %v261 = vpack.c.b16 %v241, %v240
        %v262 = vpack.c.b16 %v243, %v242
        %v263 = vpack.c.b16 %v245, %v244
        %v264 = vpack.c.b16 %v247, %v246
        %v265 = vpack.c.b16 %v249, %v248
        %v274 = vunpack.c.l.b16 %v178
        %v275 = vunpack.c.l.b16 %v179
        %v276 = vunpack.c.l.b16 %v180
        %v277 = vunpack.c.l.b16 %v181
        %v278 = vunpack.c.l.b16 %v182
        %v279 = vunpack.c.l.b16 %v183
        %v280 = vunpack.c.l.b16 %v184
        %v281 = vunpack.c.l.b16 %v185
        %v282 = vpack.c.b16 %v275, %v274
        %v283 = vpack.c.b16 %v277, %v276
        %v284 = vpack.c.b16 %v279, %v278
        %v285 = vpack.c.b16 %v281, %v280
        %vm290 = vcmask 523264
        %v292 = vsel %vm290, %v250, 0
        %v295 = vsel %vm290, %v251, 0
        %v298 = vsel %vm290, %v252, 0
        %v301 = vsel %vm290, %v253, 0
        %v304 = vsel %vm290, %v254, 0
        %v307 = vsel %vm290, %v255, 0
        %v310 = vsel %vm290, %v256, 0
        %v313 = vsel %vm290, %v257, 0
        %v316 = vsel %vm290, %v258, 0
        %v319 = vsel %vm290, %v259, 0
        %v322 = vsel %vm290, %v260, 0
        %v325 = vsel %vm290, %v261, 0
        %v328 = vsel %vm290, %v262, 0
        %v331 = vsel %vm290, %v263, 0
        %v334 = vsel %vm290, %v264, 0
        %v337 = vsel %vm290, %v265, 0
        %339 = vmatpush.bf16.msra.mxu0 0
        %340 = vmatpush.bf16.msra.mxu0 0
        %341 = vmatpush.bf16.msra.mxu0 0
        %342 = vmatpush.bf16.msra.mxu0 0
        %343 = vmatpush.bf16.msra.mxu0 %v285
        %344 = vmatpush.bf16.msra.mxu0 %v284
        %345 = vmatpush.bf16.msra.mxu0 %v283
        %346 = vmatpush.bf16.msra.mxu0 %v282
        %347 = vmatmul.bf16.gmra.mxu0 %v292
        %v348 = vpop.f32.mrf.mxu0
        %v349 = vadd.f32 0.0, %v348
        %v350 = vpop.f32.mrf.mxu0
        %v351 = vadd.f32 0.0, %v350
        %352 = vmatmul.bf16.gmra.mxu0 %v295
        %v353 = vpop.f32.mrf.mxu0
        %v354 = vadd.f32 0.0, %v353
        %v355 = vpop.f32.mrf.mxu0
        %v356 = vadd.f32 0.0, %v355
        %357 = vmatmul.bf16.gmra.mxu0 %v298
        %v358 = vpop.f32.mrf.mxu0
        %v359 = vadd.f32 0.0, %v358
        %v360 = vpop.f32.mrf.mxu0
        %v361 = vadd.f32 0.0, %v360
        %362 = vmatmul.bf16.gmra.mxu0 %v301
        %v363 = vpop.f32.mrf.mxu0
        %v364 = vadd.f32 0.0, %v363
        %v365 = vpop.f32.mrf.mxu0
        %v366 = vadd.f32 0.0, %v365
        %367 = vmatmul.bf16.gmra.mxu0 %v304
        %v368 = vpop.f32.mrf.mxu0
        %v369 = vadd.f32 0.0, %v368
        %v370 = vpop.f32.mrf.mxu0
        %v371 = vadd.f32 0.0, %v370
        %372 = vmatmul.bf16.gmra.mxu0 %v307
        %v373 = vpop.f32.mrf.mxu0
        %v374 = vadd.f32 0.0, %v373
        %v375 = vpop.f32.mrf.mxu0
        %v376 = vadd.f32 0.0, %v375
        %377 = vmatmul.bf16.gmra.mxu0 %v310
        %v378 = vpop.f32.mrf.mxu0
        %v379 = vadd.f32 0.0, %v378
        %v380 = vpop.f32.mrf.mxu0
        %v381 = vadd.f32 0.0, %v380
        %382 = vmatmul.bf16.gmra.mxu0 %v313
        %v383 = vpop.f32.mrf.mxu0
        %v384 = vadd.f32 0.0, %v383
        %v385 = vpop.f32.mrf.mxu0
        %v386 = vadd.f32 0.0, %v385
        %387 = vmatmul.bf16.gmra.mxu0 %v316
        %v388 = vpop.f32.mrf.mxu0
        %v389 = vadd.f32 0.0, %v388
        %v390 = vpop.f32.mrf.mxu0
        %v391 = vadd.f32 0.0, %v390
        %392 = vmatmul.bf16.gmra.mxu0 %v319
        %v393 = vpop.f32.mrf.mxu0
        %v394 = vadd.f32 0.0, %v393
        %v395 = vpop.f32.mrf.mxu0
        %v396 = vadd.f32 0.0, %v395
        %397 = vmatmul.bf16.gmra.mxu0 %v322
        %v398 = vpop.f32.mrf.mxu0
        %v399 = vadd.f32 0.0, %v398
        %v400 = vpop.f32.mrf.mxu0
        %v401 = vadd.f32 0.0, %v400
        %402 = vmatmul.bf16.gmra.mxu0 %v325
        %v403 = vpop.f32.mrf.mxu0
        %v404 = vadd.f32 0.0, %v403
        %v405 = vpop.f32.mrf.mxu0
        %v406 = vadd.f32 0.0, %v405
        %407 = vmatmul.bf16.gmra.mxu0 %v328
        %v408 = vpop.f32.mrf.mxu0
        %v409 = vadd.f32 0.0, %v408
        %v410 = vpop.f32.mrf.mxu0
        %v411 = vadd.f32 0.0, %v410
        %412 = vmatmul.bf16.gmra.mxu0 %v331
        %v413 = vpop.f32.mrf.mxu0
        %v414 = vadd.f32 0.0, %v413
        %v415 = vpop.f32.mrf.mxu0
        %v416 = vadd.f32 0.0, %v415
        %417 = vmatmul.bf16.gmra.mxu0 %v334
        %v418 = vpop.f32.mrf.mxu0
        %v419 = vadd.f32 0.0, %v418
        %v420 = vpop.f32.mrf.mxu0
        %v421 = vadd.f32 0.0, %v420
        %422 = vmatmul.bf16.gmra.mxu0 %v337
        %v423 = vpop.f32.mrf.mxu0
        %v424 = vadd.f32 0.0, %v423
        %v425 = vpop.f32.mrf.mxu0
        %v426 = vadd.f32 0.0, %v425
        %427 = vdwg.mxu0
        %v428 = vpack.c.bf16 %v349, %v349
        %v429 = vpack.c.bf16 %v351, %v351
        %v430 = vpack.c.bf16 %v354, %v354
        %v431 = vpack.c.bf16 %v356, %v356
        %v432 = vpack.c.bf16 %v359, %v359
        %v433 = vpack.c.bf16 %v361, %v361
        %v434 = vpack.c.bf16 %v364, %v364
        %v435 = vpack.c.bf16 %v366, %v366
        %v436 = vpack.c.bf16 %v369, %v369
        %v437 = vpack.c.bf16 %v371, %v371
        %v438 = vpack.c.bf16 %v374, %v374
        %v439 = vpack.c.bf16 %v376, %v376
        %v440 = vpack.c.bf16 %v379, %v379
        %v441 = vpack.c.bf16 %v381, %v381
        %v442 = vpack.c.bf16 %v384, %v384
        %v443 = vpack.c.bf16 %v386, %v386
        %v444 = vpack.c.bf16 %v389, %v389
        %v445 = vpack.c.bf16 %v391, %v391
        %v446 = vpack.c.bf16 %v394, %v394
        %v447 = vpack.c.bf16 %v396, %v396
        %v448 = vpack.c.bf16 %v399, %v399
        %v449 = vpack.c.bf16 %v401, %v401
        %v450 = vpack.c.bf16 %v404, %v404
        %v451 = vpack.c.bf16 %v406, %v406
        %v452 = vpack.c.bf16 %v409, %v409
        %v453 = vpack.c.bf16 %v411, %v411
        %v454 = vpack.c.bf16 %v414, %v414
        %v455 = vpack.c.bf16 %v416, %v416
        %v456 = vpack.c.bf16 %v419, %v419
        %v457 = vpack.c.bf16 %v421, %v421
        %v458 = vpack.c.bf16 %v424, %v424
        %v459 = vpack.c.bf16 %v426, %v426
        %460 = vst [vmem:[%s137] sm:$0xf] %v428
        %461 = vst [vmem:[%s137 + $0x4] sm:$0xf] %v429
        %462 = vst [vmem:[%s137 + $0x8] sm:$0xf] %v430
        %463 = vst [vmem:[%s137 + $0xc] sm:$0xf] %v431
        %464 = vst [vmem:[%s137 + $0x10] sm:$0xf] %v432
        %465 = vst [vmem:[%s137 + $0x14] sm:$0xf] %v433
        %466 = vst [vmem:[%s137 + $0x18] sm:$0xf] %v434
        %467 = vst [vmem:[%s137 + $0x1c] sm:$0xf] %v435
        %468 = vst [vmem:[%s137 + $0x20] sm:$0xf] %v436
        %469 = vst [vmem:[%s137 + $0x24] sm:$0xf] %v437
        %470 = vst [vmem:[%s137 + $0x28] sm:$0xf] %v438
        %471 = vst [vmem:[%s137 + $0x2c] sm:$0xf] %v439
        %472 = vst [vmem:[%s137 + $0x30] sm:$0xf] %v440
        %473 = vst [vmem:[%s137 + $0x34] sm:$0xf] %v441
        %474 = vst [vmem:[%s137 + $0x38] sm:$0xf] %v442
        %475 = vst [vmem:[%s137 + $0x3c] sm:$0xf] %v443
        %476 = vst [vmem:[%s137 + $0x40] sm:$0xf] %v444
        %477 = vst [vmem:[%s137 + $0x44] sm:$0xf] %v445
        %478 = vst [vmem:[%s137 + $0x48] sm:$0xf] %v446
        %479 = vst [vmem:[%s137 + $0x4c] sm:$0xf] %v447
        %480 = vst [vmem:[%s137 + $0x50] sm:$0xf] %v448
        %481 = vst [vmem:[%s137 + $0x54] sm:$0xf] %v449
        %482 = vst [vmem:[%s137 + $0x58] sm:$0xf] %v450
        %483 = vst [vmem:[%s137 + $0x5c] sm:$0xf] %v451
        %484 = vst [vmem:[%s137 + $0x60] sm:$0xf] %v452
        %485 = vst [vmem:[%s137 + $0x64] sm:$0xf] %v453
        %486 = vst [vmem:[%s137 + $0x68] sm:$0xf] %v454
        %487 = vst [vmem:[%s137 + $0x6c] sm:$0xf] %v455
        %488 = vst [vmem:[%s137 + $0x70] sm:$0xf] %v456
        %489 = vst [vmem:[%s137 + $0x74] sm:$0xf] %v457
        %490 = vst [vmem:[%s137 + $0x78] sm:$0xf] %v458
        %491 = vst [vmem:[%s137 + $0x7c] sm:$0xf] %v459
        %s492 = sand.u32 %s71, 1
        %s493 = scalar_lea.sflag [#allocation3], %s492
        %s494 = sand.u32 %s71, 1
        %s495 = smul.addr %s494, 128
        %s496 = scalar_lea.vmem [#allocation2], %s495
        // Predicated region
        $region29: #{tpu_custom_call.1} parent=27 // pred_check
          %p497 = pneg %p81
        $region30: #{tpu_custom_call.1} parent=27 // pred_check_branch
          %499 = sbr.rel (%p497) target = $region32
        $region31: #{tpu_custom_call.1} parent=27 // pred_region
          %s500 = smul.u32 32, %s16
          %502 = vsyncadd %s493, 0
          %s503 = smul.addr %s500, 4
          %s504 = scalar_lea.hbm %s2, %s503
          %s505 = sshll.u32 %s496, 4
          %s506 = int_to_ptr.vmem [resolvable:$true] %s505
          %s507 = sshll.u32 %s504, 4
          %s508 = int_to_ptr.hbm [resolvable:$true] %s507
          %513 = dma.vmem_to_hbm [thread:$0]  %s506, 2048, %s508, %s493, 64, 64, 4
        $region32: #{tpu_custom_call.1} parent=27 // pred_fallthru
          _
      $region28: #{tpu_custom_call.1} parent=5 // pred_fallthru
        _
      %p514 = scmp.le.s32.totalorder 2, %s11
      // Predicated region
      $region33: #{tpu_custom_call.1} parent=5 // pred_check
        %p515 = pneg %p514
      $region34: #{tpu_custom_call.1} parent=5 // pred_check_branch
        %517 = sbr.rel (%p515) target = $region36
      $region35: #{tpu_custom_call.1} parent=5 // pred_region
        %s518 = ssub.s32 %s11, 2
        // Predicated region
        $region37: #{tpu_custom_call.1} parent=35 // pred_check
          %p519 = pneg %p87
        $region38: #{tpu_custom_call.1} parent=35 // pred_check_branch
          %521 = sbr.rel (%p519) target = $region40
        $region39: #{tpu_custom_call.1} parent=35 // pred_region
          %s522 = sand.u32 %s72, 1
          %s523 = scalar_lea.sflag [#allocation3], %s522
          %s524 = sand.u32 %s72, 1
          %s525 = smul.addr %s524, 128
          %s526 = scalar_lea.vmem [#allocation2], %s525
          %528 = dma.done %s523, 2048
        $region40: #{tpu_custom_call.1} parent=35 // pred_fallthru
          _
      $region36: #{tpu_custom_call.1} parent=5 // pred_fallthru
        _
    $region6: #{tpu_custom_call.1} parent=1 // loop_footer
      %s15 = sadd.s32 1, %s11
    $region7: #{tpu_custom_call.1} parent=1 // loop_footer_branch
      %10 = sbr.rel target = $region3
    $region8: #{tpu_custom_call.1} parent=1 // loop_exit
      _
    %529 = vsyncpa [#allocation3], 1
    %s530 = scalar_lea.sflag [#allocation3], 1
    %531 = vsyncpa %s530, 1

</llo_original>
